<compile_context>
chip_gen: v7x
topology: tpu7x:2x2x1
jax: 0.10.0
libtpu: 0.0.40
codegen_flags: <defaults>
</compile_context>

<pallas_src>
import math
import functools

import jax
import jax.numpy as jnp
from jax.experimental import pallas as pl
from jax.experimental.pallas import tpu as pltpu


# ------------------------- hardware-aware sizing --------------------------- #

def _vmem_limit_bytes():
    # ~75% of physical VMEM: 96 MiB on v5e/v6e (128 MiB), 48 MiB on v7x (64 MiB)
    # -> leaves headroom for double-buffers / internal scratch / semaphores.
    try:
        cap = int(pltpu.get_tpu_info().vmem_capacity_bytes)
    except Exception:
        cap = 64 * 1024 * 1024
    return (cap * 3) // 4


_VMEM_LIMIT = _vmem_limit_bytes()

# GEMM tile targets (per-step VMEM stays well under the limit on all gens).
TM, TN, TK = 512, 1024, 1024
TN_LMHEAD = 2048        # lm_head is pure weight streaming; bigger lane tiles


def _pick_tile(dim, target, align):
    """Largest tile <= target that divides `dim` and is a multiple of `align`;
    falls back to the full dimension (always a legal block shape)."""
    if dim <= target:
        return dim
    t = (target // align) * align
    while t >= align:
        if dim % t == 0:
            return t
        t -= align
    return dim


# ----------------------------- Pallas kernels ------------------------------ #

def _ln_matmul_kernel(x_ref, g_ref, b_ref, w_ref, bias_ref, o_ref, xn_ref, *, gelu):
    """Fused LayerNorm -> (x_norm @ W + bias) [-> GELU].

    Grid is (M tiles, N tiles); the LayerNorm'd x tile is computed once per M
    tile (at j == 0) into VMEM scratch and reused for every N tile.  The N
    axis must stay innermost / "arbitrary" for this reuse to be valid.
    """
    @pl.when(pl.program_id(1) == 0)
    def _():
        x = x_ref[...].astype(jnp.float32)
        mean = jnp.mean(x, axis=-1, keepdims=True)
        xc = x - mean
        var = jnp.mean(xc * xc, axis=-1, keepdims=True)
        y = xc * jax.lax.rsqrt(var + 1e-5)
        y = y * g_ref[...] + b_ref[...]
        xn_ref[...] = y.astype(xn_ref.dtype)

    h = jnp.dot(xn_ref[...], w_ref[...], preferred_element_type=jnp.float32)
    h = h + bias_ref[...]
    if gelu:
        # exact (erf-based) GELU, matching torch.nn.GELU() default
        h = 0.5 * h * (1.0 + jax.lax.erf(h * (1.0 / math.sqrt(2.0))))
    o_ref[...] = h.astype(o_ref.dtype)


def ln_linear(x2d, ln_w, ln_b, w_t, bias, *, gelu=False, out_dtype=None,
              tn_target=TN):
    """x2d: [M, K]; ln_w/ln_b: [K]; w_t: [K, N]; bias: [N]."""
    M, K = x2d.shape
    K2, N = w_t.shape
    assert K == K2
    out_dtype = out_dtype or x2d.dtype
    tm = _pick_tile(M, TM, 16)
    tn = _pick_tile(N, tn_target, 128)
    grid = (M // tm, N // tn)
    kern = functools.partial(_ln_matmul_kernel, gelu=gelu)
    return pl.pallas_call(
        kern,
        out_shape=jax.ShapeDtypeStruct((M, N), out_dtype),
        grid=grid,
        in_specs=[
            pl.BlockSpec((tm, K), lambda i, j: (i, 0)),
            pl.BlockSpec((1, K), lambda i, j: (0, 0)),
            pl.BlockSpec((1, K), lambda i, j: (0, 0)),
            pl.BlockSpec((K, tn), lambda i, j: (0, j)),
            pl.BlockSpec((1, tn), lambda i, j: (0, j)),
        ],
        out_specs=pl.BlockSpec((tm, tn), lambda i, j: (i, j)),
        scratch_shapes=[pltpu.VMEM((tm, K), x2d.dtype)],
        compiler_params=pltpu.CompilerParams(
            dimension_semantics=("parallel", "arbitrary"),
            vmem_limit_bytes=_VMEM_LIMIT,
        ),
    )(x2d, ln_w.reshape(1, K), ln_b.reshape(1, K), w_t, bias.reshape(1, N))


def _matmul_kernel(x_ref, w_ref, bias_ref, *rest, add_residual):
    """Tiled matmul with f32 accumulator; epilogue adds bias (+ residual)."""
    if add_residual:
        res_ref, o_ref, acc_ref = rest
    else:
        o_ref, acc_ref = rest
    k = pl.program_id(2)

    @pl.when(k == 0)
    def _():
        acc_ref[...] = jnp.zeros_like(acc_ref)

    acc_ref[...] += jnp.dot(x_ref[...], w_ref[...],
                            preferred_element_type=jnp.float32)

    @pl.when(k == pl.num_programs(2) - 1)
    def _():
        h = acc_ref[...] + bias_ref[...]
        if add_residual:
            h = h + res_ref[...].astype(jnp.float32)
        o_ref[...] = h.astype(o_ref.dtype)


def linear(x2d, w_t, bias, residual=None, *, out_dtype=None):
    """x2d: [M, K]; w_t: [K, N]; bias: [N]; residual: optional [M, N]."""
    M, K = x2d.shape
    K2, N = w_t.shape
    assert K == K2
    out_dtype = out_dtype or x2d.dtype
    tm = _pick_tile(M, TM, 16)
    tn = _pick_tile(N, TN, 128)
    tk = _pick_tile(K, TK, 128)
    grid = (M // tm, N // tn, K // tk)
    add_res = residual is not None

    in_specs = [
        pl.BlockSpec((tm, tk), lambda i, j, k: (i, k)),
        pl.BlockSpec((tk, tn), lambda i, j, k: (k, j)),
        pl.BlockSpec((1, tn), lambda i, j, k: (0, j)),
    ]
    args = [x2d, w_t, bias.reshape(1, N)]
    if add_res:
        in_specs.append(pl.BlockSpec((tm, tn), lambda i, j, k: (i, j)))
        args.append(residual)

    kern = functools.partial(_matmul_kernel, add_residual=add_res)
    return pl.pallas_call(
        kern,
        out_shape=jax.ShapeDtypeStruct((M, N), out_dtype),
        grid=grid,
        in_specs=in_specs,
        out_specs=pl.BlockSpec((tm, tn), lambda i, j, k: (i, j)),
        scratch_shapes=[pltpu.VMEM((tm, tn), jnp.float32)],
        compiler_params=pltpu.CompilerParams(
            dimension_semantics=("parallel", "parallel", "arbitrary"),
            vmem_limit_bytes=_VMEM_LIMIT,
        ),
    )(*args)


# ------------------------------- attention --------------------------------- #

def _causal_mask(T):
    qi = jax.lax.broadcasted_iota(jnp.int32, (T, T), 0)
    ki = jax.lax.broadcasted_iota(jnp.int32, (T, T), 1)
    return qi >= ki


def _attn_head_block(q, k, v, causal, out_dtype):
    """Single-head causal attention on [T, D] tiles (1/sqrt(D) pre-folded)."""
    s = jax.lax.dot_general(q, k, (((1,), (1,)), ((), ())),
                            preferred_element_type=jnp.float32)       # [T, T]
    s = jnp.where(causal, s, -jnp.inf)   # safe: diagonal always unmasked
    m = jnp.max(s, axis=-1, keepdims=True)
    p = jnp.exp(s - m)
    p = p * pl.reciprocal(jnp.sum(p, axis=-1, keepdims=True), approx=True)
    o = jnp.dot(p.astype(v.dtype), v, preferred_element_type=jnp.float32)
    return o.astype(out_dtype)


def _attn_group_kernel(q_ref, k_ref, v_ref, o_ref, *, heads, head_dim):
    """Grid point = (batch, head-group). q/k/v refs are lane-aligned
    [1, T, group_width] tiles DMA'd straight out of the fused qkv tensor;
    each head is ref-sliced and stored directly into its output lane slice."""
    T = q_ref.shape[1]
    causal = _causal_mask(T)
    # TODO(synk): KV-tiled online-softmax (flash) for very long sequences.
    for h in range(heads):                        # static unroll within a group
        lo = h * head_dim
        o_ref[0, :, lo:lo + head_dim] = _attn_head_block(
            q_ref[0, :, lo:lo + head_dim],
            k_ref[0, :, lo:lo + head_dim],
            v_ref[0, :, lo:lo + head_dim],
            causal, o_ref.dtype)


def _attn_fused_kernel(qkv_ref, o_ref, *, n_head, head_dim):
    """Fallback for models whose head layout can't be 128-lane grouped
    (e.g. C < 128): per-head ref slices of the full [1, T, 3C] tile and
    per-head direct stores (no full-tile value load, no concatenate)."""
    C = n_head * head_dim
    T = qkv_ref.shape[1]
    causal = _causal_mask(T)
    for h in range(n_head):
        lo = h * head_dim
        o_ref[0, :, lo:lo + head_dim] = _attn_head_block(
            qkv_ref[0, :, lo:lo + head_dim],
            qkv_ref[0, :, C + lo:C + lo + head_dim],
            qkv_ref[0, :, 2 * C + lo:2 * C + lo + head_dim],
            causal, o_ref.dtype)


def causal_attention(qkv, *, n_head):
    """qkv: [B, T, 3C] (1/sqrt(D) pre-folded into q) -> [B, T, C]."""
    B, T, C3 = qkv.shape
    C = C3 // 3
    head_dim = C // n_head

    # Group heads so every q/k/v slice is a lane-aligned multiple of 128.
    gw = head_dim * 128 // math.gcd(head_dim, 128)      # lcm(head_dim, 128)
    if C % gw == 0:
        heads = gw // head_dim                           # heads per group
        n_groups = C // gw
        nb = C // gw                                     # block stride q -> k -> v
        kern = functools.partial(_attn_group_kernel, heads=heads,
                                 head_dim=head_dim)
        return pl.pallas_call(
            kern,
            out_shape=jax.ShapeDtypeStruct((B, T, C), qkv.dtype),
            grid=(B, n_groups),
            in_specs=[
                pl.BlockSpec((1, T, gw), lambda b, g: (b, 0, g)),           # q
                pl.BlockSpec((1, T, gw), lambda b, g: (b, 0, g + nb)),      # k
                pl.BlockSpec((1, T, gw), lambda b, g: (b, 0, g + 2 * nb)),  # v
            ],
            out_specs=pl.BlockSpec((1, T, gw), lambda b, g: (b, 0, g)),
            compiler_params=pltpu.CompilerParams(
                dimension_semantics=("parallel", "parallel"),
                vmem_limit_bytes=_VMEM_LIMIT,
            ),
        )(qkv, qkv, qkv)

    # Small-model fallback: full-width tile per batch element.
    kern = functools.partial(_attn_fused_kernel, n_head=n_head,
                             head_dim=head_dim)
    return pl.pallas_call(
        kern,
        out_shape=jax.ShapeDtypeStruct((B, T, C), qkv.dtype),
        grid=(B,),
        in_specs=[pl.BlockSpec((1, T, C3), lambda b: (b, 0, 0))],
        out_specs=pl.BlockSpec((1, T, C), lambda b: (b, 0, 0)),
        compiler_params=pltpu.CompilerParams(
            dimension_semantics=("parallel",),
            vmem_limit_bytes=_VMEM_LIMIT,
        ),
    )(qkv)


# ----------------------------- Model (glue) -------------------------------- #

def init_params(key, *, vocab, block_size, n_layer, n_head, n_embd):
    C = n_embd
    head_dim = C // n_head
    attn_scale = 1.0 / math.sqrt(head_dim)
    std = 0.02
    proj_std = 0.02 / math.sqrt(2 * n_layer)
    keys = jax.random.split(key, 2 + 4 * n_layer)
    k_it = iter(keys)

    def normal(shape, s):
        return s * jax.random.normal(next(k_it), shape, dtype=jnp.float32)

    # Pad the (tied) lm_head weight along vocab so the logits GEMM always gets
    # clean lane-aligned tiles; logits are sliced back to the true vocab.
    pad_to = 2048 if vocab >= 2048 else 128
    vocab_pad = ((vocab + pad_to - 1) // pad_to) * pad_to

    wte = normal((vocab, C), std)
    wte_t = jnp.zeros((C, vocab_pad), jnp.float32).at[:, :vocab].set(wte.T)

    params = {
        "vocab": vocab,
        "wte": wte.astype(jnp.bfloat16),                  # token embedding (tied)
        "wte_t": wte_t.astype(jnp.bfloat16),              # padded, pre-transposed lm_head
        "wpe": normal((block_size, C), std).astype(jnp.bfloat16),
        "ln_f_w": jnp.ones((C,), jnp.float32),
        "ln_f_b": jnp.zeros((C,), jnp.float32),
        "lm_head_b": jnp.zeros((vocab_pad,), jnp.float32),  # lm_head has no bias
        "blocks": [],
    }
    for _ in range(n_layer):
        # torch Linear weight is (out, in); fold 1/sqrt(head_dim) into the q
        # output rows (and bias) once, offline.
        qkv_w = normal((3 * C, C), std)
        qkv_w = qkv_w.at[:C, :].multiply(attn_scale)
        qkv_b = jnp.zeros((3 * C,), jnp.float32).at[:C].multiply(attn_scale)
        blk = {
            "ln1_w": jnp.ones((C,), jnp.float32),
            "ln1_b": jnp.zeros((C,), jnp.float32),
            "qkv_w_t": qkv_w.T.astype(jnp.bfloat16),       # store transpose (in, out)
            "qkv_b": qkv_b,
            "attn_proj_w_t": normal((C, C), proj_std).T.astype(jnp.bfloat16),
            "attn_proj_b": jnp.zeros((C,), jnp.float32),
            "ln2_w": jnp.ones((C,), jnp.float32),
            "ln2_b": jnp.zeros((C,), jnp.float32),
            "fc_w_t": normal((4 * C, C), std).T.astype(jnp.bfloat16),
            "fc_b": jnp.zeros((4 * C,), jnp.float32),
            "mlp_proj_w_t": normal((C, 4 * C), proj_std).T.astype(jnp.bfloat16),
            "mlp_proj_b": jnp.zeros((C,), jnp.float32),
        }
        params["blocks"].append(blk)
    return params


def gpt_forward(params, idx, *, n_head):
    B, T = idx.shape
    C = params["wte"].shape[1]
    vocab = params["vocab"]

    # TODO(synk): embedding gather stays in plain JAX (no clean Pallas win).
    tok_emb = jnp.take(params["wte"], idx, axis=0)        # [B, T, C] bf16
    pos_emb = params["wpe"][:T]                           # [T, C]
    x2 = (tok_emb.astype(jnp.float32) + pos_emb.astype(jnp.float32)[None, :, :])
    x2 = x2.reshape(B * T, C).astype(jnp.bfloat16)

    for blk in params["blocks"]:
        # --- attention sub-block: LN fused into QKV, residual fused into proj
        qkv = ln_linear(x2, blk["ln1_w"], blk["ln1_b"], blk["qkv_w_t"], blk["qkv_b"])
        y = causal_attention(qkv.reshape(B, T, 3 * C), n_head=n_head)
        x2 = linear(y.reshape(B * T, C), blk["attn_proj_w_t"], blk["attn_proj_b"],
                    residual=x2)

        # --- MLP sub-block: LN + FC + GELU fused, residual fused into proj
        h = ln_linear(x2, blk["ln2_w"], blk["ln2_b"], blk["fc_w_t"], blk["fc_b"],
                      gelu=True)
        x2 = linear(h, blk["mlp_proj_w_t"], blk["mlp_proj_b"], residual=x2)

    # inference path (targets=None): ln_f fused into the tied lm_head,
    # applied only to the last position (as in GPT.forward).
    x_last = x2.reshape(B, T, C)[:, -1, :]                # [B, C]
    logits = ln_linear(x_last, params["ln_f_w"], params["ln_f_b"],
                       params["wte_t"], params["lm_head_b"],
                       out_dtype=jnp.float32, tn_target=TN_LMHEAD)
    return logits[:, :vocab].reshape(B, 1, vocab)         # loss = None


# Pure-jnp f32 reference (same math, same bf16-rounded weights) for sanity.
def gpt_forward_ref(params, idx, *, n_head):
    B, T = idx.shape
    C = params["wte"].shape[1]
    hd = C // n_head
    f32 = lambda a: a.astype(jnp.float32)

    def ln(x, w, b):
        m = jnp.mean(x, -1, keepdims=True)
        v = jnp.mean((x - m) ** 2, -1, keepdims=True)
        return (x - m) / jnp.sqrt(v + 1e-5) * w + b

    x = f32(jnp.take(params["wte"], idx, axis=0)) + f32(params["wpe"][:T])[None]
    for blk in params["blocks"]:
        h = ln(x, blk["ln1_w"], blk["ln1_b"])
        qkv = h @ f32(blk["qkv_w_t"]) + blk["qkv_b"]
        q, k, v = qkv[..., :C], qkv[..., C:2 * C], qkv[..., 2 * C:]
        q = q.reshape(B, T, n_head, hd).transpose(0, 2, 1, 3)
        k = k.reshape(B, T, n_head, hd).transpose(0, 2, 1, 3)
        v = v.reshape(B, T, n_head, hd).transpose(0, 2, 1, 3)
        # NOTE: 1/sqrt(head_dim) is pre-folded into the stored qkv weights.
        s = jnp.einsum("bhqd,bhkd->bhqk", q, k)
        mask = jnp.tril(jnp.ones((T, T), bool))
        s = jnp.where(mask, s, -jnp.inf)
        p = jax.nn.softmax(s, axis=-1)
        y = jnp.einsum("bhqk,bhkd->bhqd", p, v).transpose(0, 2, 1, 3).reshape(B, T, C)
        x = x + (y @ f32(blk["attn_proj_w_t"]) + blk["attn_proj_b"])
        h = ln(x, blk["ln2_w"], blk["ln2_b"])
        h = h @ f32(blk["fc_w_t"]) + blk["fc_b"]
        h = 0.5 * h * (1.0 + jax.lax.erf(h / jnp.sqrt(2.0)))
        x = x + (h @ f32(blk["mlp_proj_w_t"]) + blk["mlp_proj_b"])
    x = ln(x, params["ln_f_w"], params["ln_f_b"])
    return x[:, -1:, :] @ f32(params["wte"]).T


if __name__ == "__main__":
    def run_check(*, vocab, block_size, n_layer, n_head, n_embd, B, T):
        key = jax.random.PRNGKey(0)
        pkey, ikey = jax.random.split(key)
        params = init_params(pkey, vocab=vocab, block_size=block_size,
                             n_layer=n_layer, n_head=n_head, n_embd=n_embd)
        idx = jax.random.randint(ikey, (B, T), 0, vocab, dtype=jnp.int32)

        logits = jax.block_until_ready(gpt_forward(params, idx, n_head=n_head))
        assert logits.shape == (B, 1, vocab), logits.shape

        ref = jax.block_until_ready(gpt_forward_ref(params, idx, n_head=n_head))
        max_err = float(jnp.max(jnp.abs(logits - ref)))
        # bf16 storage / bf16 MXU inputs + approx reciprocal -> tolerance ~5e-2
        assert max_err < 5e-2, max_err
        return max_err

    # exercises the lane-aligned head-group attention path (head_dim = 64)
    run_check(vocab=256, block_size=16, n_layer=2, n_head=2, n_embd=128, B=2, T=8)
    # exercises the small-model fallback attention path (C < 128)
    run_check(vocab=256, block_size=16, n_layer=2, n_head=4, n_embd=64, B=2, T=8)

    print("KERNEL_OK")
</pallas_src>

<mosaic_0001>
module attributes {stable_mosaic.version = 11 : i64} {
  func.func @_ln_matmul_kernel(%arg0: i32, %arg1: i32, %arg2: memref<16x128xbf16, #tpu.memory_space<vmem>>, %arg3: memref<1x128xf32, #tpu.memory_space<vmem>>, %arg4: memref<1x128xf32, #tpu.memory_space<vmem>>, %arg5: memref<128x384xbf16, #tpu.memory_space<vmem>>, %arg6: memref<1x384xf32, #tpu.memory_space<vmem>>, %arg7: memref<16x384xbf16, #tpu.memory_space<vmem>>, %arg8: memref<16x128xbf16, #tpu.memory_space<vmem>>) attributes {dimension_semantics = [#tpu.dimension_semantics<parallel>, #tpu.dimension_semantics<arbitrary>], iteration_bounds = array<i64: 1, 1>, scalar_prefetch = 0 : i64, scratch_operands = 1 : i64, tpu.core_type = #tpu.core_type<tc>, window_params = [{transform_indices = @transform_0, window_bounds = array<i64: 16, 128>}, {pipeline_mode = #tpu.pipeline_mode<synchronous>, transform_indices = @transform_1, window_bounds = array<i64: 1, 128>}, {pipeline_mode = #tpu.pipeline_mode<synchronous>, transform_indices = @transform_2, window_bounds = array<i64: 1, 128>}, {transform_indices = @transform_3, window_bounds = array<i64: 128, 384>}, {transform_indices = @transform_4, window_bounds = array<i64: 1, 384>}, {transform_indices = @transform_5, window_bounds = array<i64: 16, 384>}]} {
    %c0_i32 = arith.constant 0 : i32
    %0 = arith.cmpi eq, %arg1, %c0_i32 : i32
    %1 = arith.extui %0 : i1 to i32
    %c0_i32_0 = arith.constant 0 : i32
    %2 = arith.cmpi ne, %1, %c0_i32_0 : i32
    scf.if %2 {
      %c0_8 = arith.constant 0 : index
      %c0_9 = arith.constant 0 : index
      %11 = vector.load %arg2[%c0_8, %c0_9] : memref<16x128xbf16, #tpu.memory_space<vmem>>, vector<16x128xbf16>
      %12 = arith.extf %11 : vector<16x128xbf16> to vector<16x128xf32>
      %cst_10 = arith.constant dense<0.000000e+00> : vector<16xf32>
      %13 = vector.multi_reduction <add>, %12, %cst_10 [1] : vector<16x128xf32> to vector<16xf32>
      %14 = vector.shape_cast %13 : vector<16xf32> to vector<16x1xf32>
      %cst_11 = arith.constant 1.280000e+02 : f32
      %15 = vector.broadcast %cst_11 : f32 to vector<16x1xf32>
      %16 = arith.divf %14, %15 : vector<16x1xf32>
      %17 = vector.broadcast %16 : vector<16x1xf32> to vector<16x128xf32>
      %18 = arith.subf %12, %17 : vector<16x128xf32>
      %19 = arith.mulf %18, %18 : vector<16x128xf32>
      %cst_12 = arith.constant dense<0.000000e+00> : vector<16xf32>
      %20 = vector.multi_reduction <add>, %19, %cst_12 [1] : vector<16x128xf32> to vector<16xf32>
      %21 = vector.shape_cast %20 : vector<16xf32> to vector<16x1xf32>
      %cst_13 = arith.constant 1.280000e+02 : f32
      %22 = vector.broadcast %cst_13 : f32 to vector<16x1xf32>
      %23 = arith.divf %21, %22 : vector<16x1xf32>
      %cst_14 = arith.constant 9.99999974E-6 : f32
      %24 = vector.broadcast %cst_14 : f32 to vector<16x1xf32>
      %25 = arith.addf %23, %24 : vector<16x1xf32>
      %26 = math.rsqrt %25 : vector<16x1xf32>
      %27 = vector.broadcast %26 : vector<16x1xf32> to vector<16x128xf32>
      %28 = arith.mulf %18, %27 : vector<16x128xf32>
      %c0_15 = arith.constant 0 : index
      %c0_16 = arith.constant 0 : index
      %29 = vector.load %arg3[%c0_15, %c0_16] : memref<1x128xf32, #tpu.memory_space<vmem>>, vector<1x128xf32>
      %30 = vector.broadcast %29 : vector<1x128xf32> to vector<16x128xf32>
      %31 = arith.mulf %28, %30 : vector<16x128xf32>
      %c0_17 = arith.constant 0 : index
      %c0_18 = arith.constant 0 : index
      %32 = vector.load %arg4[%c0_17, %c0_18] : memref<1x128xf32, #tpu.memory_space<vmem>>, vector<1x128xf32>
      %33 = vector.broadcast %32 : vector<1x128xf32> to vector<16x128xf32>
      %34 = arith.addf %31, %33 : vector<16x128xf32>
      %35 = arith.truncf %34 : vector<16x128xf32> to vector<16x128xbf16>
      %c0_19 = arith.constant 0 : index
      %c0_20 = arith.constant 0 : index
      %36 = vector.load %arg8[%c0_19, %c0_20] : memref<16x128xbf16, #tpu.memory_space<vmem>>, vector<16x128xbf16>
      tpu.vector_store %arg8[%c0_19, %c0_20], %35 {strides = array<i32>} : memref<16x128xbf16, #tpu.memory_space<vmem>>, vector<16x128xbf16>,
    } else {
    }
    %c0 = arith.constant 0 : index
    %c0_1 = arith.constant 0 : index
    %3 = vector.load %arg8[%c0, %c0_1] : memref<16x128xbf16, #tpu.memory_space<vmem>>, vector<16x128xbf16>
    %c0_2 = arith.constant 0 : index
    %c0_3 = arith.constant 0 : index
    %4 = vector.load %arg5[%c0_2, %c0_3] : memref<128x384xbf16, #tpu.memory_space<vmem>>, vector<128x384xbf16>
    %cst = arith.constant dense<0.000000e+00> : vector<16x384xf32>
    %5 = tpu.matmul %3, %4, %cst {dimension_numbers = #tpu.dot_dimension_numbers<[1], [0], [0], [1], [0, 0, 1, 1], [], []>} : vector<16x128xbf16>, vector<128x384xbf16>, vector<16x384xf32> -> vector<16x384xf32>
    %c0_4 = arith.constant 0 : index
    %c0_5 = arith.constant 0 : index
    %6 = vector.load %arg6[%c0_4, %c0_5] : memref<1x384xf32, #tpu.memory_space<vmem>>, vector<1x384xf32>
    %7 = vector.broadcast %6 : vector<1x384xf32> to vector<16x384xf32>
    %8 = arith.addf %5, %7 : vector<16x384xf32>
    %9 = arith.truncf %8 : vector<16x384xf32> to vector<16x384xbf16>
    %c0_6 = arith.constant 0 : index
    %c0_7 = arith.constant 0 : index
    %10 = vector.load %arg7[%c0_6, %c0_7] : memref<16x384xbf16, #tpu.memory_space<vmem>>, vector<16x384xbf16>
    tpu.vector_store %arg7[%c0_6, %c0_7], %9 {strides = array<i32>} : memref<16x384xbf16, #tpu.memory_space<vmem>>, vector<16x384xbf16>,
    return
  }
  func.func @transform_0(%arg0: i32, %arg1: i32) -> (i32, i32) {
    %c0_i32 = arith.constant 0 : i32
    %c0_i32_0 = arith.constant 0 : i32
    return %arg0, %c0_i32 : i32, i32
  }
  func.func @transform_1(%arg0: i32, %arg1: i32) -> (i32, i32) {
    %c0_i32 = arith.constant 0 : i32
    %c0_i32_0 = arith.constant 0 : i32
    %c0_i32_1 = arith.constant 0 : i32
    return %c0_i32, %c0_i32_0 : i32, i32
  }
  func.func @transform_2(%arg0: i32, %arg1: i32) -> (i32, i32) {
    %c0_i32 = arith.constant 0 : i32
    %c0_i32_0 = arith.constant 0 : i32
    %c0_i32_1 = arith.constant 0 : i32
    return %c0_i32, %c0_i32_0 : i32, i32
  }
  func.func @transform_3(%arg0: i32, %arg1: i32) -> (i32, i32) {
    %c0_i32 = arith.constant 0 : i32
    %c0_i32_0 = arith.constant 0 : i32
    return %c0_i32, %arg1 : i32, i32
  }
  func.func @transform_4(%arg0: i32, %arg1: i32) -> (i32, i32) {
    %c0_i32 = arith.constant 0 : i32
    %c0_i32_0 = arith.constant 0 : i32
    return %c0_i32, %arg1 : i32, i32
  }
  func.func @transform_5(%arg0: i32, %arg1: i32) -> (i32, i32) {
    %c0_i32 = arith.constant 0 : i32
    return %arg0, %arg1 : i32, i32
  }
}

</mosaic_0001>

<llo_original>
// kernel: tpu_custom_call.1
$region0: #{tpu_custom_call.1}
  #allocation0 [shape = 'u32[]', space=smem, size = 0x4, offset = 0x4, fixed_abs, tag = 'smem constant byte address 0x4 - core index']
  #allocation1 [shape = 'u32[144,128]{1,0:T(1,128)}', space=vmem, size = 0x12000, scoped, tag = 'internal scratch']
  #allocation2 [shape = 'bf16[16,128]{1,0:T(16,128)(2,1)}', space=vmem, size = 0x1000, scoped, tag = 'scratch operand']
  %s0 = inlined_call_operand.hbm [shape: bf16[16,128], index: 0, kind: input, shape index: {}]
  %s1 = inlined_call_operand.vmem [shape: f32[1,128], index: 1, kind: input, shape index: {}]
  %s2 = inlined_call_operand.vmem [shape: f32[1,128], index: 2, kind: input, shape index: {}]
  %s3 = inlined_call_operand.hbm [shape: bf16[128,384], index: 3, kind: input, shape index: {}]
  %s4 = inlined_call_operand.vmem [shape: f32[1,384], index: 4, kind: input, shape index: {}]
  %s5 = inlined_call_operand.hbm [shape: bf16[16,384], index: 5, kind: output, shape index: {}]
  %s6 = sld [smem:[#allocation0]]
  $region42: #{tpu_custom_call.1} parent=0
    _
  %s8 = ssub.s32 1, %s6
  %s9 = scalar_select 0, %s8, %s6
  $region1: #{tpu_custom_call.1} parent=0
    #allocation3 [shape = 'u8[4096]{0}', space=vmem, size = 0x1000, scoped, tag = 'input window, operand 0, single buffered']
    #allocation4 [shape = 's32[1]{0}', space=sflag, size = 0x4, scoped, tag = 'scoped memory for tpu_custom_call.1']
    #allocation5 [shape = 's32[1]{0}', space=sflag, size = 0x4, scoped, tag = 'scoped memory for tpu_custom_call.1']
    #allocation6 [shape = 'u8[98304]{0}', space=vmem, size = 0x18000, scoped, tag = 'input window, operand 3, single buffered']
    #allocation7 [shape = 's32[1]{0}', space=sflag, size = 0x4, scoped, tag = 'scoped memory for tpu_custom_call.1']
    #allocation8 [shape = 'u8[12288]{0}', space=vmem, size = 0x3000, scoped, tag = 'output window, operand 0, single buffered']
    %10 = vsyncpa [#allocation4], 0
    %11 = vsyncpa [#allocation7], 0
    %12 = vsyncpa [#allocation5], 0
    // Predicated region
    $region2: #{tpu_custom_call.1} parent=1 // pred_check
      _
    $region3: #{tpu_custom_call.1} parent=1 // pred_check_branch
      %14 = sbr.rel (0) target = $region5
    $region4: #{tpu_custom_call.1} parent=1 // pred_region
      %s16 = ssub.s32 128, 128
      %17 = vsyncadd [#allocation4], %s16
      %s18 = sshll.u32 [#allocation3], 4
      %s19 = int_to_ptr.vmem [resolvable:$true] %s18
      %24 = dma.hbm_to_vmem [thread:$0]  %s0, 128, %s19, [#allocation4], 64, 64, 4
    $region5: #{tpu_custom_call.1} parent=1 // pred_fallthru
      _
    // Predicated region
    $region6: #{tpu_custom_call.1} parent=1 // pred_check
      _
    $region7: #{tpu_custom_call.1} parent=1 // pred_check_branch
      %26 = sbr.rel (0) target = $region9
    $region8: #{tpu_custom_call.1} parent=1 // pred_region
      _
    $region9: #{tpu_custom_call.1} parent=1 // pred_fallthru
      _
    // Predicated region
    $region10: #{tpu_custom_call.1} parent=1 // pred_check
      _
    $region11: #{tpu_custom_call.1} parent=1 // pred_check_branch
      %28 = sbr.rel (0) target = $region13
    $region12: #{tpu_custom_call.1} parent=1 // pred_region
      _
    $region13: #{tpu_custom_call.1} parent=1 // pred_fallthru
      _
    // Predicated region
    $region14: #{tpu_custom_call.1} parent=1 // pred_check
      _
    $region15: #{tpu_custom_call.1} parent=1 // pred_check_branch
      %30 = sbr.rel (0) target = $region17
    $region16: #{tpu_custom_call.1} parent=1 // pred_region
      %s32 = ssub.s32 3072, 3072
      %33 = vsyncadd [#allocation7], %s32
      %s34 = sshll.u32 [#allocation6], 4
      %s35 = int_to_ptr.vmem [resolvable:$true] %s34
      %40 = dma.hbm_to_vmem [thread:$0]  %s3, 3072, %s35, [#allocation7], 192, 192, 12
    $region17: #{tpu_custom_call.1} parent=1 // pred_fallthru
      _
    // Predicated region
    $region18: #{tpu_custom_call.1} parent=1 // pred_check
      _
    $region19: #{tpu_custom_call.1} parent=1 // pred_check_branch
      %42 = sbr.rel (0) target = $region21
    $region20: #{tpu_custom_call.1} parent=1 // pred_region
      _
    $region21: #{tpu_custom_call.1} parent=1 // pred_fallthru
      _
    // Predicated region
    $region22: #{tpu_custom_call.1} parent=1 // pred_check
      _
    $region23: #{tpu_custom_call.1} parent=1 // pred_check_branch
      %44 = sbr.rel (0) target = $region25
    $region24: #{tpu_custom_call.1} parent=1 // pred_region
      %45 = dma.done [#allocation4], 128
    $region25: #{tpu_custom_call.1} parent=1 // pred_fallthru
      _
    // Predicated region
    $region26: #{tpu_custom_call.1} parent=1 // pred_check
      _
    $region27: #{tpu_custom_call.1} parent=1 // pred_check_branch
      %47 = sbr.rel (0) target = $region29
    $region28: #{tpu_custom_call.1} parent=1 // pred_region
      %48 = dma.done [#allocation7], 3072
    $region29: #{tpu_custom_call.1} parent=1 // pred_fallthru
      _
    %p50 = scmp.eq.s32.totalorder 0, 0
    // Predicated region
    $region30: #{tpu_custom_call.1} parent=1 // pred_check
      %p51 = pneg %p50
    $region31: #{tpu_custom_call.1} parent=1 // pred_check_branch
      %53 = sbr.rel (%p51) target = $region33
    $region32: #{tpu_custom_call.1} parent=1 // pred_region
      %v54 = vld [vmem:[#allocation3] sm:$0xf]
      %v55 = vld [vmem:[#allocation3 + $0x4] sm:$0xf]
      %v56 = vunpack.c.l.bf16 %v54
      %v57 = vunpack.c.l.bf16 %v55
      %58 = vadd.xlane.f32.xlu0 %v56
      %v59 = vpop.xlane.xlu0 %58
      %60 = vadd.xlane.f32.xlu0 %v57
      %v61 = vpop.xlane.xlu0 %60
      %v62 = vrcp.pop 128.0
      %v63 = vmul.f32 %v59, %v62
      %v64 = vmul.f32 %v61, %v62
      %v65 = vsub.f32 %v56, %v63
      %v66 = vsub.f32 %v57, %v64
      %v67 = vmul.f32 %v65, %v65
      %v68 = vmul.f32 %v66, %v66
      %69 = vadd.xlane.f32.xlu0 %v67
      %v70 = vpop.xlane.xlu0 %69
      %71 = vadd.xlane.f32.xlu0 %v68
      %v72 = vpop.xlane.xlu0 %71
      %v73 = vmul.f32 %v70, %v62
      %v74 = vmul.f32 %v72, %v62
      %v75 = vadd.f32 %v73, 1e-05
      %v76 = vadd.f32 %v74, 1e-05
      %v77 = vrsqrt.pop %v75
      %v78 = vrsqrt.pop %v76
      %v79 = vmul.f32 %v65, %v77
      %v80 = vmul.f32 %v66, %v78
      %v81 = vld [vmem:[%s1] sm:$0x1]
      %v83 = vlaneseq
      %v84 = vshrl.u32 %v83, 7
      %v85 = vsub.s32 0, %v84
      %v86 = vrot.slane %v81, %v85
      %v88 = vmul.f32 %v79, %v86
      %v89 = vmul.f32 %v80, %v86
      %v90 = vld [vmem:[%s2] sm:$0x1]
      %v92 = vlaneseq
      %v93 = vshrl.u32 %v92, 7
      %v94 = vsub.s32 0, %v93
      %v95 = vrot.slane %v90, %v94
      %v97 = vadd.f32 %v88, %v95
      %v98 = vadd.f32 %v89, %v95
      %v99 = vpack.c.bf16 %v98, %v97
      %100 = vst [vmem:[#allocation2] sm:$0xff] %v99
    $region33: #{tpu_custom_call.1} parent=1 // pred_fallthru
      _
    %v101 = vld [vmem:[#allocation2] sm:$0xff]
    %v102 = vld [vmem:[#allocation6] sm:$0xff]
    %v103 = vld [vmem:[#allocation6 + $0x8] sm:$0xf]
    %v104 = vld [vmem:[#allocation6 + $0xc] sm:$0xff]
    %v105 = vld [vmem:[#allocation6 + $0x14] sm:$0xf]
    %v106 = vld [vmem:[#allocation6 + $0x18] sm:$0xff]
    %v107 = vld [vmem:[#allocation6 + $0x20] sm:$0xf]
    %v108 = vld [vmem:[#allocation6 + $0x24] sm:$0xff]
    %v109 = vld [vmem:[#allocation6 + $0x2c] sm:$0xf]
    %v110 = vld [vmem:[#allocation6 + $0x30] sm:$0xff]
    %v111 = vld [vmem:[#allocation6 + $0x38] sm:$0xf]
    %v112 = vld [vmem:[#allocation6 + $0x3c] sm:$0xff]
    %v113 = vld [vmem:[#allocation6 + $0x44] sm:$0xf]
    %v114 = vld [vmem:[#allocation6 + $0x48] sm:$0xff]
    %v115 = vld [vmem:[#allocation6 + $0x50] sm:$0xf]
    %v116 = vld [vmem:[#allocation6 + $0x54] sm:$0xff]
    %v117 = vld [vmem:[#allocation6 + $0x5c] sm:$0xf]
    %v118 = vld [vmem:[#allocation6 + $0x60] sm:$0xff]
    %v119 = vld [vmem:[#allocation6 + $0x68] sm:$0xf]
    %v120 = vld [vmem:[#allocation6 + $0x6c] sm:$0xff]
    %v121 = vld [vmem:[#allocation6 + $0x74] sm:$0xf]
    %v122 = vld [vmem:[#allocation6 + $0x78] sm:$0xff]
    %v123 = vld [vmem:[#allocation6 + $0x80] sm:$0xf]
    %v124 = vld [vmem:[#allocation6 + $0x84] sm:$0xff]
    %v125 = vld [vmem:[#allocation6 + $0x8c] sm:$0xf]
    %v126 = vld [vmem:[#allocation6 + $0x90] sm:$0xff]
    %v127 = vld [vmem:[#allocation6 + $0x98] sm:$0xf]
    %v128 = vld [vmem:[#allocation6 + $0x9c] sm:$0xff]
    %v129 = vld [vmem:[#allocation6 + $0xa4] sm:$0xf]
    %v130 = vld [vmem:[#allocation6 + $0xa8] sm:$0xff]
    %v131 = vld [vmem:[#allocation6 + $0xb0] sm:$0xf]
    %v132 = vld [vmem:[#allocation6 + $0xb4] sm:$0xff]
    %v133 = vld [vmem:[#allocation6 + $0xbc] sm:$0xf]
    %v134 = vld [vmem:[%s4] sm:$0x7]
    %v136 = vlaneseq
    %v137 = vshrl.u32 %v136, 7
    %v138 = vsub.s32 0, %v137
    %v139 = vrot.slane %v134, %v138
    %v140 = vlaneseq
    %v141 = vshrl.u32 %v140, 7
    %v142 = vsub.s32 1, %v141
    %v143 = vrot.slane %v134, %v142
    %v144 = vlaneseq
    %v145 = vshrl.u32 %v144, 7
    %v146 = vsub.s32 2, %v145
    %v147 = vrot.slane %v134, %v146
    %v183 = vunpack.c.l.b16 %v102
    %v184 = vunpack.c.h.b16 %v102
    %v185 = vunpack.c.l.b16 %v103
    %v186 = vunpack.c.l.b16 %v104
    %v187 = vunpack.c.h.b16 %v104
    %v188 = vunpack.c.l.b16 %v105
    %v189 = vunpack.c.l.b16 %v106
    %v190 = vunpack.c.h.b16 %v106
    %v191 = vunpack.c.l.b16 %v107
    %v192 = vunpack.c.l.b16 %v108
    %v193 = vunpack.c.h.b16 %v108
    %v194 = vunpack.c.l.b16 %v109
    %v195 = vunpack.c.l.b16 %v110
    %v196 = vunpack.c.h.b16 %v110
    %v197 = vunpack.c.l.b16 %v111
    %v198 = vunpack.c.l.b16 %v112
    %v199 = vunpack.c.h.b16 %v112
    %v200 = vunpack.c.l.b16 %v113
    %v201 = vunpack.c.l.b16 %v114
    %v202 = vunpack.c.h.b16 %v114
    %v203 = vunpack.c.l.b16 %v115
    %v204 = vunpack.c.l.b16 %v116
    %v205 = vunpack.c.h.b16 %v116
    %v206 = vunpack.c.l.b16 %v117
    %v207 = vunpack.c.l.b16 %v118
    %v208 = vunpack.c.h.b16 %v118
    %v209 = vunpack.c.l.b16 %v119
    %v210 = vunpack.c.l.b16 %v120
    %v211 = vunpack.c.h.b16 %v120
    %v212 = vunpack.c.l.b16 %v121
    %v213 = vunpack.c.l.b16 %v122
    %v214 = vunpack.c.h.b16 %v122
    %v215 = vunpack.c.l.b16 %v123
    %v216 = vunpack.c.l.b16 %v124
    %v217 = vunpack.c.h.b16 %v124
    %v218 = vunpack.c.l.b16 %v125
    %v219 = vunpack.c.l.b16 %v126
    %v220 = vunpack.c.h.b16 %v126
    %v221 = vunpack.c.l.b16 %v127
    %v222 = vunpack.c.l.b16 %v128
    %v223 = vunpack.c.h.b16 %v128
    %v224 = vunpack.c.l.b16 %v129
    %v225 = vunpack.c.l.b16 %v130
    %v226 = vunpack.c.h.b16 %v130
    %v227 = vunpack.c.l.b16 %v131
    %v228 = vunpack.c.l.b16 %v132
    %v229 = vunpack.c.h.b16 %v132
    %v230 = vunpack.c.l.b16 %v133
    %v231 = vpack.c.b16 %v186, %v183
    %v232 = vpack.c.b16 %v187, %v184
    %v233 = vpack.c.b16 %v188, %v185
    %v234 = vpack.c.b16 %v192, %v189
    %v235 = vpack.c.b16 %v193, %v190
    %v236 = vpack.c.b16 %v194, %v191
    %v237 = vpack.c.b16 %v198, %v195
    %v238 = vpack.c.b16 %v199, %v196
    %v239 = vpack.c.b16 %v200, %v197
    %v240 = vpack.c.b16 %v204, %v201
    %v241 = vpack.c.b16 %v205, %v202
    %v242 = vpack.c.b16 %v206, %v203
    %v243 = vpack.c.b16 %v210, %v207
    %v244 = vpack.c.b16 %v211, %v208
    %v245 = vpack.c.b16 %v212, %v209
    %v246 = vpack.c.b16 %v216, %v213
    %v247 = vpack.c.b16 %v217, %v214
    %v248 = vpack.c.b16 %v218, %v215
    %v249 = vpack.c.b16 %v222, %v219
    %v250 = vpack.c.b16 %v223, %v220
    %v251 = vpack.c.b16 %v224, %v221
    %v252 = vpack.c.b16 %v228, %v225
    %v253 = vpack.c.b16 %v229, %v226
    %v254 = vpack.c.b16 %v230, %v227
    %279 = vmatprep.subr.bf16.mxu0 %v232
    %280 = vmatpush1.bf16.msra.mxu0 %v231
    %281 = vmatprep.subr.bf16.mxu0 %v235
    %282 = vmatpush1.bf16.msra.mxu0 %v234
    %283 = vmatprep.subr.bf16.mxu0 %v238
    %284 = vmatpush1.bf16.msra.mxu0 %v237
    %285 = vmatprep.subr.bf16.mxu0 %v241
    %286 = vmatpush1.bf16.msra.mxu0 %v240
    %287 = vmatprep.subr.bf16.mxu0 %v244
    %288 = vmatpush1.bf16.msra.mxu0 %v243
    %289 = vmatprep.subr.bf16.mxu0 %v247
    %290 = vmatpush1.bf16.msra.mxu0 %v246
    %291 = vmatprep.subr.bf16.mxu0 %v250
    %292 = vmatpush1.bf16.msra.mxu0 %v249
    %293 = vmatprep.subr.bf16.mxu0 %v253
    %294 = vmatpush1.bf16.msra.mxu0 %v252
    %295 = vmatprep.subr.bf16.mxu0 0
    %296 = vmatpush1.bf16.msra.mxu0 0
    %297 = vmatprep.subr.bf16.mxu0 0
    %298 = vmatpush1.bf16.msra.mxu0 0
    %299 = vmatprep.subr.bf16.mxu0 0
    %300 = vmatpush1.bf16.msra.mxu0 0
    %301 = vmatprep.subr.bf16.mxu0 0
    %302 = vmatpush1.bf16.msra.mxu0 0
    %303 = vmatprep.subr.bf16.mxu0 0
    %304 = vmatpush1.bf16.msra.mxu0 0
    %305 = vmatprep.subr.bf16.mxu0 0
    %306 = vmatpush1.bf16.msra.mxu0 0
    %307 = vmatprep.subr.bf16.mxu0 0
    %308 = vmatpush1.bf16.msra.mxu0 0
    %309 = vmatprep.subr.bf16.mxu0 0
    %310 = vmatpush1.bf16.msra.mxu0 0
    %311 = vmatprep.mubr.bf16.mxu0 0
    %312 = vmatmul.mubr.bf16.gmra.mrb[0].mxu0 %v101
    %v313 = vpop.f32.mrb[0].mxu0
    %v314 = vadd.f32 %v139, %v313
    %v315 = vpop.f32.mrb[0].mxu0
    %v316 = vadd.f32 %v143, %v315
    %v317 = vpop.f32.mrb[0].mxu0
    %v318 = vadd.f32 %v139, %v317
    %v319 = vpop.f32.mrb[0].mxu0
    %v320 = vadd.f32 %v143, %v319
    %321 = vdwg.mxu0
    %322 = vmatprep.subr.bf16.mxu0 0
    %323 = vmatpush1.bf16.msra.mxu0 %v233
    %324 = vmatprep.subr.bf16.mxu0 0
    %325 = vmatpush1.bf16.msra.mxu0 %v236
    %326 = vmatprep.subr.bf16.mxu0 0
    %327 = vmatpush1.bf16.msra.mxu0 %v239
    %328 = vmatprep.subr.bf16.mxu0 0
    %329 = vmatpush1.bf16.msra.mxu0 %v242
    %330 = vmatprep.subr.bf16.mxu0 0
    %331 = vmatpush1.bf16.msra.mxu0 %v245
    %332 = vmatprep.subr.bf16.mxu0 0
    %333 = vmatpush1.bf16.msra.mxu0 %v248
    %334 = vmatprep.subr.bf16.mxu0 0
    %335 = vmatpush1.bf16.msra.mxu0 %v251
    %336 = vmatprep.subr.bf16.mxu0 0
    %337 = vmatpush1.bf16.msra.mxu0 %v254
    %338 = vmatprep.subr.bf16.mxu0 0
    %339 = vmatpush1.bf16.msra.mxu0 0
    %340 = vmatprep.subr.bf16.mxu0 0
    %341 = vmatpush1.bf16.msra.mxu0 0
    %342 = vmatprep.subr.bf16.mxu0 0
    %343 = vmatpush1.bf16.msra.mxu0 0
    %344 = vmatprep.subr.bf16.mxu0 0
    %345 = vmatpush1.bf16.msra.mxu0 0
    %346 = vmatprep.subr.bf16.mxu0 0
    %347 = vmatpush1.bf16.msra.mxu0 0
    %348 = vmatprep.subr.bf16.mxu0 0
    %349 = vmatpush1.bf16.msra.mxu0 0
    %350 = vmatprep.subr.bf16.mxu0 0
    %351 = vmatpush1.bf16.msra.mxu0 0
    %352 = vmatprep.subr.bf16.mxu0 0
    %353 = vmatpush1.bf16.msra.mxu0 0
    %354 = vmatprep.mubr.bf16.mxu0 0
    %355 = vmatmul.mubr.bf16.gmra.mrb[0].mxu0 %v101
    %v356 = vpop.f32.mrb[0].mxu0
    %v357 = vadd.f32 %v147, %v356
    %v358 = vpop.f32.mrb[0].mxu0
    %v359 = vpop.f32.mrb[0].mxu0
    %v360 = vadd.f32 %v147, %v359
    %v361 = vpop.f32.mrb[0].mxu0
    %362 = vdwg.mxu0
    %v363 = vpack.c.bf16 %v318, %v314
    %v364 = vpack.c.bf16 %v320, %v316
    %v365 = vpack.c.bf16 %v360, %v357
    %v369 = vunpack.c.l.b16 %v363
    %v370 = vunpack.c.l.b16 %v364
    %v371 = vunpack.c.l.b16 %v365
    %v372 = vunpack.c.h.b16 %v363
    %v373 = vunpack.c.h.b16 %v364
    %v374 = vunpack.c.h.b16 %v365
    %v375 = vpack.c.b16 %v370, %v369
    %v376 = vpack.c.b16 %v371, %v371
    %v377 = vpack.c.b16 %v373, %v372
    %v378 = vpack.c.b16 %v374, %v374
    %383 = vst [vmem:[#allocation8] sm:$0xff] %v375
    %384 = vst [vmem:[#allocation8 + $0x8] sm:$0xf] %v376
    %385 = vst [vmem:[#allocation8 + $0xc] sm:$0xff] %v377
    %386 = vst [vmem:[#allocation8 + $0x14] sm:$0xf] %v378
    // Predicated region
    $region34: #{tpu_custom_call.1} parent=1 // pred_check
      _
    $region35: #{tpu_custom_call.1} parent=1 // pred_check_branch
      %388 = sbr.rel (0) target = $region37
    $region36: #{tpu_custom_call.1} parent=1 // pred_region
      %s390 = ssub.s32 384, 384
      %391 = vsyncadd [#allocation5], %s390
      %s392 = sshll.u32 [#allocation8], 4
      %s393 = int_to_ptr.vmem [resolvable:$true] %s392
      %398 = dma.vmem_to_hbm [thread:$0]  %s393, 384, %s5, [#allocation5], 192, 192, 12
    $region37: #{tpu_custom_call.1} parent=1 // pred_fallthru
      _
    // Predicated region
    $region38: #{tpu_custom_call.1} parent=1 // pred_check
      _
    $region39: #{tpu_custom_call.1} parent=1 // pred_check_branch
      %400 = sbr.rel (0) target = $region41
    $region40: #{tpu_custom_call.1} parent=1 // pred_region
      %401 = dma.done [#allocation5], 384
    $region41: #{tpu_custom_call.1} parent=1 // pred_fallthru
      _
    %402 = vsyncpa [#allocation4], 1
    %403 = vsyncpa [#allocation7], 1
    %404 = vsyncpa [#allocation5], 1

</llo_original>
